<compile_context>
chip_gen: v6e
topology: v6e:2x2x1
jax: 0.10.0
libtpu: 0.0.40
codegen_flags: <defaults>
</compile_context>

<pallas_src>
import functools

import jax
import jax.numpy as jnp
from jax.experimental import pallas as pl
from jax.experimental.pallas import tpu as pltpu


def theta_mlp_kernel(x_ref, consts_ref, w2_ref, w3_ref, o_ref, *, compute_dtype):
    # x_ref:      (1, TB)  batch tile, batch on lanes (f32)
    # consts_ref: (H, 8)   packed columns: 0=w1, 1=b1, 2=b2, 3=b3, 4=w4, 5=b4
    # w2_ref/w3_ref: (H, H) PyTorch [out, in] layout, dtype == compute_dtype
    # o_ref:      (1, TB)
    f32 = jnp.float32
    x = x_ref[...]                       # (1, TB)
    c = consts_ref[...]                  # (H, 8)
    w1 = c[:, 0:1]                       # (H, 1)
    b1 = c[:, 1:2]
    b2 = c[:, 2:3]
    b3 = c[:, 3:4]
    w4 = c[:, 4:5]
    b4 = c[0:1, 5:6]                     # (1, 1)

    # Layer 1 (in_features == 1): broadcast outer product on the VPU.
    # tanh evaluated in compute_dtype: on v6e/v7x a bf16 compute_dtype doubles
    # throughput on the single (binding) EUP slot.
    h = jnp.tanh((w1 * x + b1).astype(compute_dtype))       # (H, TB)

    # Layers 2/3: MXU matmuls, batch tile on the lane (N) dim, f32 accumulate.
    h = jnp.tanh(
        (jnp.dot(w2_ref[...], h, preferred_element_type=f32) + b2)
        .astype(compute_dtype))
    h = jnp.tanh(
        (jnp.dot(w3_ref[...], h, preferred_element_type=f32) + b3)
        .astype(compute_dtype))

    # Layer 4 (out_features == 1): elementwise mul + sublane reduce (XLU) in
    # f32; result stays lane-dense as (1, TB).
    y = jnp.sum(w4 * h.astype(f32), axis=0, keepdims=True) + b4
    o_ref[...] = y.astype(o_ref.dtype)


def pack_consts(params):
    """Pack all small per-feature constants into one resident (H, 8) block.

    Call this ONCE next to init_params and reuse the result: it removes ~6
    tiny scatter ops and an HBM round-trip from every forward call.
    """
    H = params["w2"].shape[0]
    consts = jnp.zeros((H, 8), jnp.float32)
    consts = consts.at[:, 0].set(params["w1"][:, 0].astype(jnp.float32))
    consts = consts.at[:, 1].set(params["b1"].astype(jnp.float32))
    consts = consts.at[:, 2].set(params["b2"].astype(jnp.float32))
    consts = consts.at[:, 3].set(params["b3"].astype(jnp.float32))
    consts = consts.at[:, 4].set(params["w4"][0, :].astype(jnp.float32))
    consts = consts.at[:, 5].set(params["b4"][0].astype(jnp.float32))
    return consts


def _choose_batch_tile(B):
    """Pick a large, VMEM-safe, lane-aligned batch tile with an even grid."""
    CAP = 8192  # ~3 live (H, TB) f32 intermediates stay well inside v7x VMEM
    if B <= 2 * CAP:
        half = B // 2
        if B % 2 == 0 and half % 128 == 0:
            return half       # even grid of 2: both v7x TensorCores get work
        return B              # single full-array tile (always layout-legal)
    best = None
    for tb in range(CAP, 127, -128):
        if B % tb == 0:
            if (B // tb) % 2 == 0:
                return tb     # even grid preferred for v7x megacore
            if best is None:
                best = tb
    return best if best is not None else B


def theta_mlp_forward(x, params, consts=None, *, tb_lanes=None,
                      compute_dtype=jnp.float32):
    """x: [B, 1] float32. params: PyTorch-layout weights (w: [out, in], b: [out]).

    consts: optional pre-packed (H, 8) block from pack_consts(params).
    compute_dtype: jnp.float32 (default; v5e and strict tolerance) or
                   jnp.bfloat16 (v6e/v7x, ~2x EUP throughput, looser tolerance).
    """
    B, one = x.shape
    assert one == 1
    H = params["w2"].shape[0]
    if consts is None:
        consts = pack_consts(params)   # prefer packing once at init time

    tb = tb_lanes if tb_lanes is not None else _choose_batch_tile(B)
    assert B % tb == 0, "batch must be divisible by the batch tile"
    assert tb % 128 == 0 or tb == B, "batch tile must be lane-aligned or full"
    grid = B // tb

    w2 = params["w2"].astype(compute_dtype)
    w3 = params["w3"].astype(compute_dtype)
    x_lanes = x.reshape(1, B).astype(jnp.float32)   # batch on the lane dim

    # Advisory cost for XLA's scheduler (zero-cost change).
    w_item = jnp.dtype(compute_dtype).itemsize
    cost = pl.CostEstimate(
        flops=int(2 * B * (2 * H * H + 2 * H)),
        transcendentals=int(3 * H * B),
        bytes_accessed=int(2 * 4 * B + 2 * H * H * w_item + H * 8 * 4),
    )

    out = pl.pallas_call(
        functools.partial(theta_mlp_kernel, compute_dtype=compute_dtype),
        out_shape=jax.ShapeDtypeStruct((1, B), x.dtype),
        grid_spec=pltpu.PrefetchScalarGridSpec(
            num_scalar_prefetch=0,
            grid=(grid,),
            in_specs=[
                pl.BlockSpec((1, tb), lambda i: (0, i)),   # x batch tile
                pl.BlockSpec((H, 8), lambda i: (0, 0)),    # packed consts
                pl.BlockSpec((H, H), lambda i: (0, 0)),    # w2 (resident)
                pl.BlockSpec((H, H), lambda i: (0, 0)),    # w3 (resident)
            ],
            out_specs=pl.BlockSpec((1, tb), lambda i: (0, i)),
        ),
        compiler_params=pltpu.CompilerParams(
            dimension_semantics=("parallel",)),
        cost_estimate=cost,
    )(x_lanes, consts, w2, w3)
    return out.reshape(B, 1)


def init_params(key, hidden_dim):
    """PyTorch nn.Linear default init: U(-1/sqrt(fan_in), 1/sqrt(fan_in)),
    weights stored in PyTorch [out_features, in_features] layout."""
    def linear(key, fan_in, fan_out):
        kw, kb = jax.random.split(key)
        bound = 1.0 / jnp.sqrt(jnp.float32(fan_in))
        w = jax.random.uniform(kw, (fan_out, fan_in), jnp.float32, -bound, bound)
        b = jax.random.uniform(kb, (fan_out,), jnp.float32, -bound, bound)
        return w, b

    k1, k2, k3, k4 = jax.random.split(key, 4)
    w1, b1 = linear(k1, 1, hidden_dim)
    w2, b2 = linear(k2, hidden_dim, hidden_dim)
    w3, b3 = linear(k3, hidden_dim, hidden_dim)
    w4, b4 = linear(k4, hidden_dim, 1)
    return dict(w1=w1, b1=b1, w2=w2, b2=b2, w3=w3, b3=b3, w4=w4, b4=b4)


def theta_mlp_ref(x, p):
    h = jnp.tanh(x @ p["w1"].T + p["b1"])
    h = jnp.tanh(h @ p["w2"].T + p["b2"])
    h = jnp.tanh(h @ p["w3"].T + p["b3"])
    return h @ p["w4"].T + p["b4"]


if __name__ == "__main__":
    key = jax.random.PRNGKey(0)
    kp, kx = jax.random.split(key)

    hidden_dim = 32
    batch = 2048   # auto-tiled to (1, 1024) x 2 -> even grid (both v7x TCs busy)

    params = init_params(kp, hidden_dim)
    consts = pack_consts(params)   # hoisted: packed once, reused every call
    x = jax.random.uniform(kx, (batch, 1), jnp.float32, -jnp.pi, jnp.pi)

    out = theta_mlp_forward(x, params, consts)   # f32 path (strict tolerance)
    out = jax.block_until_ready(out)

    ref = theta_mlp_ref(x, params)
    assert out.shape == (batch, 1)
    assert jnp.allclose(out, ref, atol=2e-5, rtol=2e-5), "mismatch vs reference"

    print("KERNEL_OK")
</pallas_src>

<mosaic_0001>
module attributes {stable_mosaic.version = 11 : i64} {
  func.func @theta_mlp_kernel(%arg0: i32, %arg1: memref<1x1024xf32, #tpu.memory_space<vmem>>, %arg2: memref<32x8xf32, #tpu.memory_space<vmem>>, %arg3: memref<32x32xf32, #tpu.memory_space<vmem>>, %arg4: memref<32x32xf32, #tpu.memory_space<vmem>>, %arg5: memref<1x1024xf32, #tpu.memory_space<vmem>>) attributes {dimension_semantics = [#tpu.dimension_semantics<parallel>], iteration_bounds = array<i64: 2>, scalar_prefetch = 0 : i64, scratch_operands = 0 : i64, tpu.core_type = #tpu.core_type<tc>, window_params = [{transform_indices = @transform_0, window_bounds = array<i64: 1, 1024>}, {pipeline_mode = #tpu.pipeline_mode<synchronous>, transform_indices = @transform_1, window_bounds = array<i64: 32, 8>}, {pipeline_mode = #tpu.pipeline_mode<synchronous>, transform_indices = @transform_2, window_bounds = array<i64: 32, 32>}, {pipeline_mode = #tpu.pipeline_mode<synchronous>, transform_indices = @transform_3, window_bounds = array<i64: 32, 32>}, {transform_indices = @transform_4, window_bounds = array<i64: 1, 1024>}]} {
    %c0 = arith.constant 0 : index
    %c0_0 = arith.constant 0 : index
    %0 = vector.load %arg1[%c0, %c0_0] : memref<1x1024xf32, #tpu.memory_space<vmem>>, vector<1x1024xf32>
    %c0_1 = arith.constant 0 : index
    %c0_2 = arith.constant 0 : index
    %1 = vector.load %arg2[%c0_1, %c0_2] : memref<32x8xf32, #tpu.memory_space<vmem>>, vector<32x8xf32>
    %2 = vector.extract_strided_slice %1 {offsets = [0, 0], sizes = [32, 1], strides = [1, 1]} : vector<32x8xf32> to vector<32x1xf32>
    %3 = vector.extract_strided_slice %1 {offsets = [0, 1], sizes = [32, 1], strides = [1, 1]} : vector<32x8xf32> to vector<32x1xf32>
    %4 = vector.extract_strided_slice %1 {offsets = [0, 2], sizes = [32, 1], strides = [1, 1]} : vector<32x8xf32> to vector<32x1xf32>
    %5 = vector.extract_strided_slice %1 {offsets = [0, 3], sizes = [32, 1], strides = [1, 1]} : vector<32x8xf32> to vector<32x1xf32>
    %6 = vector.extract_strided_slice %1 {offsets = [0, 4], sizes = [32, 1], strides = [1, 1]} : vector<32x8xf32> to vector<32x1xf32>
    %7 = vector.extract_strided_slice %1 {offsets = [0, 5], sizes = [1, 1], strides = [1, 1]} : vector<32x8xf32> to vector<1x1xf32>
    %8 = vector.broadcast %2 : vector<32x1xf32> to vector<32x1024xf32>
    %9 = vector.broadcast %0 : vector<1x1024xf32> to vector<32x1024xf32>
    %10 = arith.mulf %8, %9 : vector<32x1024xf32>
    %11 = vector.broadcast %3 : vector<32x1xf32> to vector<32x1024xf32>
    %12 = arith.addf %10, %11 : vector<32x1024xf32>
    %13 = math.tanh %12 : vector<32x1024xf32>
    %c0_3 = arith.constant 0 : index
    %c0_4 = arith.constant 0 : index
    %14 = vector.load %arg3[%c0_3, %c0_4] : memref<32x32xf32, #tpu.memory_space<vmem>>, vector<32x32xf32>
    %cst = arith.constant dense<0.000000e+00> : vector<32x1024xf32>
    %15 = tpu.matmul %14, %13, %cst {dimension_numbers = #tpu.dot_dimension_numbers<[1], [0], [0], [1], [0, 0, 1, 1], [], []>} : vector<32x32xf32>, vector<32x1024xf32>, vector<32x1024xf32> -> vector<32x1024xf32>
    %16 = vector.broadcast %4 : vector<32x1xf32> to vector<32x1024xf32>
    %17 = arith.addf %15, %16 : vector<32x1024xf32>
    %18 = math.tanh %17 : vector<32x1024xf32>
    %c0_5 = arith.constant 0 : index
    %c0_6 = arith.constant 0 : index
    %19 = vector.load %arg4[%c0_5, %c0_6] : memref<32x32xf32, #tpu.memory_space<vmem>>, vector<32x32xf32>
    %cst_7 = arith.constant dense<0.000000e+00> : vector<32x1024xf32>
    %20 = tpu.matmul %19, %18, %cst_7 {dimension_numbers = #tpu.dot_dimension_numbers<[1], [0], [0], [1], [0, 0, 1, 1], [], []>} : vector<32x32xf32>, vector<32x1024xf32>, vector<32x1024xf32> -> vector<32x1024xf32>
    %21 = vector.broadcast %5 : vector<32x1xf32> to vector<32x1024xf32>
    %22 = arith.addf %20, %21 : vector<32x1024xf32>
    %23 = math.tanh %22 : vector<32x1024xf32>
    %24 = vector.broadcast %6 : vector<32x1xf32> to vector<32x1024xf32>
    %25 = arith.mulf %24, %23 : vector<32x1024xf32>
    %cst_8 = arith.constant dense<0.000000e+00> : vector<1024xf32>
    %26 = vector.multi_reduction <add>, %25, %cst_8 [0] : vector<32x1024xf32> to vector<1024xf32>
    %27 = vector.shape_cast %26 : vector<1024xf32> to vector<1x1024xf32>
    %28 = vector.broadcast %7 : vector<1x1xf32> to vector<1x1024xf32>
    %29 = arith.addf %27, %28 : vector<1x1024xf32>
    %c0_9 = arith.constant 0 : index
    %c0_10 = arith.constant 0 : index
    %30 = vector.load %arg5[%c0_9, %c0_10] : memref<1x1024xf32, #tpu.memory_space<vmem>>, vector<1x1024xf32>
    tpu.vector_store %arg5[%c0_9, %c0_10], %29 {strides = array<i32>} : memref<1x1024xf32, #tpu.memory_space<vmem>>, vector<1x1024xf32>,
    return
  }
  func.func @transform_0(%arg0: i32) -> (i32, i32) {
    %c0_i32 = arith.constant 0 : i32
    %c0_i32_0 = arith.constant 0 : i32
    return %c0_i32, %arg0 : i32, i32
  }
  func.func @transform_1(%arg0: i32) -> (i32, i32) {
    %c0_i32 = arith.constant 0 : i32
    %c0_i32_0 = arith.constant 0 : i32
    %c0_i32_1 = arith.constant 0 : i32
    return %c0_i32, %c0_i32_0 : i32, i32
  }
  func.func @transform_2(%arg0: i32) -> (i32, i32) {
    %c0_i32 = arith.constant 0 : i32
    %c0_i32_0 = arith.constant 0 : i32
    %c0_i32_1 = arith.constant 0 : i32
    return %c0_i32, %c0_i32_0 : i32, i32
  }
  func.func @transform_3(%arg0: i32) -> (i32, i32) {
    %c0_i32 = arith.constant 0 : i32
    %c0_i32_0 = arith.constant 0 : i32
    %c0_i32_1 = arith.constant 0 : i32
    return %c0_i32, %c0_i32_0 : i32, i32
  }
  func.func @transform_4(%arg0: i32) -> (i32, i32) {
    %c0_i32 = arith.constant 0 : i32
    %c0_i32_0 = arith.constant 0 : i32
    return %c0_i32, %arg0 : i32, i32
  }
}

</mosaic_0001>

<llo_original>
// kernel: tpu_custom_call.1
$region0: #{tpu_custom_call.1}
  #allocation0 [shape = 'u32[]', space=smem, size = 0x4, offset = 0x4, fixed_abs, tag = 'smem constant byte address 0x4 - core index']
  #allocation1 [shape = 'u32[144,128]{1,0:T(1,128)}', space=vmem, size = 0x12000, scoped, tag = 'internal scratch']
  %s0 = inlined_call_operand.hbm [shape: f32[1,2048], index: 0, kind: input, shape index: {}]
  %s1 = inlined_call_operand.vmem [shape: f32[32,8], index: 1, kind: input, shape index: {}]
  %s2 = inlined_call_operand.vmem [shape: f32[32,32], index: 2, kind: input, shape index: {}]
  %s3 = inlined_call_operand.hbm [shape: f32[32,32], index: 3, kind: input, shape index: {}]
  %s4 = inlined_call_operand.hbm [shape: f32[1,2048], index: 4, kind: output, shape index: {}]
  %s5 = sld [smem:[#allocation0]]
  $region57: #{tpu_custom_call.1} parent=0
    _
  %s7 = ssub.s32 1, %s5
  %s8 = scalar_select 0, %s7, %s5
  $region1: #{tpu_custom_call.1} parent=0
    #allocation2 [shape = 'u8[8192]{0}', space=vmem, size = 0x2000, scoped, tag = 'input window, operand 0']
    #allocation3 [shape = 's32[2]{0}', space=sflag, size = 0x8, scoped, tag = 'scoped memory for tpu_custom_call.1']
    #allocation4 [shape = 's32[2]{0}', space=sflag, size = 0x8, scoped, tag = 'scoped memory for tpu_custom_call.1']
    #allocation5 [shape = 'u8[16384]{0}', space=vmem, size = 0x4000, scoped, tag = 'input window, operand 3, single buffered']
    #allocation6 [shape = 's32[1]{0}', space=sflag, size = 0x4, scoped, tag = 'scoped memory for tpu_custom_call.1']
    #allocation7 [shape = 'u8[8192]{0}', space=vmem, size = 0x2000, scoped, tag = 'output window, operand 0']
    %9 = vsyncpa [#allocation3], 0
    %s10 = scalar_lea.sflag [#allocation3], 1
    %11 = vsyncpa %s10, 0
    %12 = vsyncpa [#allocation6], 0
    %13 = vsyncpa [#allocation4], 0
    %s14 = scalar_lea.sflag [#allocation4], 1
    %15 = vsyncpa %s14, 0
    loop: start=0, step=1, limit=4
    $region2: #{tpu_custom_call.1} parent=1 // loop_pre_header
      _
    $region3: #{tpu_custom_call.1} parent=1 // loop_header
      %s17 = sphi 0, %s21
      %p18 = scmp.ge.s32.totalorder %s17, 4
      %s27 = sphi 0, %s29
      %s30 = sphi 0, %s27
      %s31 = sphi 0, %s30
      %s47 = sphi 0, %s31
      %s51 = sphi 0, %s51
      %s53 = sphi 0, %s51
      %s54 = sphi 0, %s53
      %s68 = sphi 0, %s54
      %s72 = sphi 0, %s72
      %s74 = sphi 0, %s72
      %s75 = sphi 0, %s74
      %s89 = sphi 0, %s75
      %s93 = sphi 0, %s93
      %s95 = sphi 0, %s93
      %s96 = sphi 0, %s95
      %s110 = sphi 0, %s96
      %s116 = sphi 0, %s118
      %s119 = sphi 0, %s116
      %s120 = sphi 0, %s119
      %s136 = sphi 0, %s120
    $region4: #{tpu_custom_call.1} parent=1 // loop_header_branch
      %20 = sbr.rel (%p18) target = $region8
    $region5: #{tpu_custom_call.1} parent=1 // loop_body
      %s22 = ssub.s32 %s17, 1
      %s23 = ssub.s32 %s17, 2
      %s24 = sadd.s32 %s17, 1
      %s25 = ssub.s32 %s17, %s24
      %p26 = scmp.eq.s32.totalorder %s25, 0
      %s28 = sadd.s32 %s27, 1
      %s29 = scalar_select %p26, %s27, %s28
      %p32 = pneg %p26
      %p33 = scmp.eq.s32.totalorder %s17, 1
      %p34 = por %p32, %p33
      %p35 = scmp.ne.s32.totalorder %s27, %s30
      %p36 = scmp.eq.s32.totalorder %s17, 0
      %p37 = por %p35, %p36
      %p38 = scmp.ne.s32.totalorder %s27, %s30
      %p39 = scmp.eq.s32.totalorder %s22, 1
      %p40 = por %p38, %p39
      %p41 = scmp.ne.s32.totalorder %s30, %s31
      %p42 = scmp.eq.s32.totalorder %s22, 0
      %p43 = por %p41, %p42
      %p44 = scmp.ne.s32.totalorder %s30, %s31
      %p45 = scmp.eq.s32.totalorder %s23, 1
      %p46 = por %p44, %p45
      %p48 = scmp.ne.s32.totalorder %s31, %s47
      %p49 = scmp.eq.s32.totalorder %s23, 0
      %p50 = por %p48, %p49
      %s52 = sadd.s32 %s51, 1
      %p55 = scmp.eq.s32.totalorder %s17, 1
      %p56 = scmp.ne.s32.totalorder %s51, %s53
      %p57 = scmp.eq.s32.totalorder %s17, 0
      %p58 = por %p56, %p57
      %p59 = scmp.ne.s32.totalorder %s51, %s53
      %p60 = scmp.eq.s32.totalorder %s22, 1
      %p61 = por %p59, %p60
      %p62 = scmp.ne.s32.totalorder %s53, %s54
      %p63 = scmp.eq.s32.totalorder %s22, 0
      %p64 = por %p62, %p63
      %p65 = scmp.ne.s32.totalorder %s53, %s54
      %p66 = scmp.eq.s32.totalorder %s23, 1
      %p67 = por %p65, %p66
      %p69 = scmp.ne.s32.totalorder %s54, %s68
      %p70 = scmp.eq.s32.totalorder %s23, 0
      %p71 = por %p69, %p70
      %s73 = sadd.s32 %s72, 1
      %p76 = scmp.eq.s32.totalorder %s17, 1
      %p77 = scmp.ne.s32.totalorder %s72, %s74
      %p78 = scmp.eq.s32.totalorder %s17, 0
      %p79 = por %p77, %p78
      %p80 = scmp.ne.s32.totalorder %s72, %s74
      %p81 = scmp.eq.s32.totalorder %s22, 1
      %p82 = por %p80, %p81
      %p83 = scmp.ne.s32.totalorder %s74, %s75
      %p84 = scmp.eq.s32.totalorder %s22, 0
      %p85 = por %p83, %p84
      %p86 = scmp.ne.s32.totalorder %s74, %s75
      %p87 = scmp.eq.s32.totalorder %s23, 1
      %p88 = por %p86, %p87
      %p90 = scmp.ne.s32.totalorder %s75, %s89
      %p91 = scmp.eq.s32.totalorder %s23, 0
      %p92 = por %p90, %p91
      %s94 = sadd.s32 %s93, 1
      %p97 = scmp.eq.s32.totalorder %s17, 1
      %p98 = scmp.ne.s32.totalorder %s93, %s95
      %p99 = scmp.eq.s32.totalorder %s17, 0
      %p100 = por %p98, %p99
      %p101 = scmp.ne.s32.totalorder %s93, %s95
      %p102 = scmp.eq.s32.totalorder %s22, 1
      %p103 = por %p101, %p102
      %p104 = scmp.ne.s32.totalorder %s95, %s96
      %p105 = scmp.eq.s32.totalorder %s22, 0
      %p106 = por %p104, %p105
      %p107 = scmp.ne.s32.totalorder %s95, %s96
      %p108 = scmp.eq.s32.totalorder %s23, 1
      %p109 = por %p107, %p108
      %p111 = scmp.ne.s32.totalorder %s96, %s110
      %p112 = scmp.eq.s32.totalorder %s23, 0
      %p113 = por %p111, %p112
      %s114 = ssub.s32 %s17, %s24
      %p115 = scmp.eq.s32.totalorder %s114, 0
      %s117 = sadd.s32 %s116, 1
      %s118 = scalar_select %p115, %s116, %s117
      %p121 = pneg %p115
      %p122 = scmp.eq.s32.totalorder %s17, 1
      %p123 = por %p121, %p122
      %p124 = scmp.ne.s32.totalorder %s116, %s119
      %p125 = scmp.eq.s32.totalorder %s17, 0
      %p126 = por %p124, %p125
      %p127 = scmp.ne.s32.totalorder %s116, %s119
      %p128 = scmp.eq.s32.totalorder %s22, 1
      %p129 = por %p127, %p128
      %p130 = scmp.ne.s32.totalorder %s119, %s120
      %p131 = scmp.eq.s32.totalorder %s22, 0
      %p132 = por %p130, %p131
      %p133 = scmp.ne.s32.totalorder %s119, %s120
      %p134 = scmp.eq.s32.totalorder %s23, 1
      %p135 = por %p133, %p134
      %p137 = scmp.ne.s32.totalorder %s120, %s136
      %p138 = scmp.eq.s32.totalorder %s23, 0
      %p139 = por %p137, %p138
      %p140 = scmp.le.s32.totalorder 1, %s17
      %p141 = scmp.lt.s32.totalorder %s17, 3
      %p142 = pnand %p140, %p141
      %p143 = pneg %p142
      // Predicated region
      $region9: #{tpu_custom_call.1} parent=5 // pred_check
        _
      $region10: #{tpu_custom_call.1} parent=5 // pred_check_branch
        %145 = sbr.rel (%p142) target = $region12
      $region11: #{tpu_custom_call.1} parent=5 // pred_region
        %s146 = ssub.s32 %s17, 1
        // Predicated region
        $region13: #{tpu_custom_call.1} parent=11 // pred_check
          %p147 = pneg %p64
        $region14: #{tpu_custom_call.1} parent=11 // pred_check_branch
          %149 = sbr.rel (%p147) target = $region16
        $region15: #{tpu_custom_call.1} parent=11 // pred_region
          _
        $region16: #{tpu_custom_call.1} parent=11 // pred_fallthru
          _
        // Predicated region
        $region17: #{tpu_custom_call.1} parent=11 // pred_check
          %p150 = pneg %p85
        $region18: #{tpu_custom_call.1} parent=11 // pred_check_branch
          %152 = sbr.rel (%p150) target = $region20
        $region19: #{tpu_custom_call.1} parent=11 // pred_region
          _
        $region20: #{tpu_custom_call.1} parent=11 // pred_fallthru
          _
        // Predicated region
        $region21: #{tpu_custom_call.1} parent=11 // pred_check
          %p153 = pneg %p106
        $region22: #{tpu_custom_call.1} parent=11 // pred_check_branch
          %155 = sbr.rel (%p153) target = $region24
        $region23: #{tpu_custom_call.1} parent=11 // pred_region
          %s157 = ssub.s32 512, 512
          %158 = vsyncadd [#allocation6], %s157
          %s159 = sshll.u32 [#allocation5], 4
          %s160 = int_to_ptr.vmem [resolvable:$true] %s159
          %165 = dma.hbm_to_vmem [thread:$0]  %s3, 512, %s160, [#allocation6], 128, 128, 8
        $region24: #{tpu_custom_call.1} parent=11 // pred_fallthru
          _
      $region12: #{tpu_custom_call.1} parent=5 // pred_fallthru
        _
      %p166 = scmp.lt.s32.totalorder %s17, 2
      // Predicated region
      $region25: #{tpu_custom_call.1} parent=5 // pred_check
        %p167 = pneg %p166
      $region26: #{tpu_custom_call.1} parent=5 // pred_check_branch
        %169 = sbr.rel (%p167) target = $region28
      $region27: #{tpu_custom_call.1} parent=5 // pred_region
        // Predicated region
        $region29: #{tpu_custom_call.1} parent=27 // pred_check
          %p170 = pneg %p37
        $region30: #{tpu_custom_call.1} parent=27 // pred_check_branch
          %172 = sbr.rel (%p170) target = $region32
        $region31: #{tpu_custom_call.1} parent=27 // pred_region
          %s173 = sand.u32 %s27, 1
          %s174 = scalar_lea.sflag [#allocation3], %s173
          %s175 = sand.u32 %s27, 1
          %s176 = smul.addr %s175, 8
          %s177 = scalar_lea.vmem [#allocation2], %s176
          %s178 = smul.u32 8, %s17
          %s180 = ssub.s32 128, 128
          %181 = vsyncadd %s174, %s180
          %s182 = smul.addr %s178, 16
          %s183 = scalar_lea.hbm %s0, %s182
          %s185 = sshll.u32 %s177, 4
          %s186 = int_to_ptr.vmem [resolvable:$true] %s185
          %188 = dma.hbm_to_vmem [thread:$0]  %s183, 128, %s186, %s174
        $region32: #{tpu_custom_call.1} parent=27 // pred_fallthru
          _
      $region28: #{tpu_custom_call.1} parent=5 // pred_fallthru
        _
      %p189 = scmp.le.s32.totalorder 1, %s17
      %p190 = scmp.lt.s32.totalorder %s17, 3
      %p191 = pnand %p189, %p190
      %p192 = pneg %p191
      // Predicated region
      $region33: #{tpu_custom_call.1} parent=5 // pred_check
        _
      $region34: #{tpu_custom_call.1} parent=5 // pred_check_branch
        %194 = sbr.rel (%p191) target = $region36
      $region35: #{tpu_custom_call.1} parent=5 // pred_region
        %s195 = ssub.s32 %s17, 1
        %s196 = sand.u32 %s30, 1
        %s197 = scalar_lea.sflag [#allocation3], %s196
        %s198 = sand.u32 %s30, 1
        %s199 = smul.addr %s198, 8
        %s200 = scalar_lea.vmem [#allocation2], %s199
        // Predicated region
        $region37: #{tpu_custom_call.1} parent=35 // pred_check
          %p201 = pneg %p43
        $region38: #{tpu_custom_call.1} parent=35 // pred_check_branch
          %203 = sbr.rel (%p201) target = $region40
        $region39: #{tpu_custom_call.1} parent=35 // pred_region
          %204 = dma.done %s197, 128
        $region40: #{tpu_custom_call.1} parent=35 // pred_fallthru
          _
        // Predicated region
        $region41: #{tpu_custom_call.1} parent=35 // pred_check
          %p205 = pneg %p106
        $region42: #{tpu_custom_call.1} parent=35 // pred_check_branch
          %207 = sbr.rel (%p205) target = $region44
        $region43: #{tpu_custom_call.1} parent=35 // pred_region
          %208 = dma.done [#allocation6], 512
        $region44: #{tpu_custom_call.1} parent=35 // pred_fallthru
          _
        %s209 = sand.u32 %s30, 1
        %s210 = scalar_lea.sflag [#allocation3], %s209
        %s211 = sand.u32 %s30, 1
        %s212 = smul.addr %s211, 8
        %s213 = scalar_lea.vmem [#allocation2], %s212
        %p214 = pneg %p43
        %p215 = pneg %p40
        %p216 = pneg %p64
        %p217 = pneg %p61
        %p218 = pneg %p85
        %p219 = pneg %p82
        %p220 = pneg %p106
        %p221 = pneg %p103
        %p222 = pneg %p132
        %p223 = pneg %p129
        %s224 = sand.u32 %s119, 1
        %s225 = scalar_lea.sflag [#allocation4], %s224
        %s226 = sand.u32 %s119, 1
        %s227 = smul.addr %s226, 8
        %s228 = scalar_lea.vmem [#allocation7], %s227
        %s229 = smul.u32 8, %s22
        %s230 = smul.u32 8, %s22
        %v231 = vld [vmem:[%s200] sm:$0xff]
        %v232 = vld [vmem:[%s1] sm:$0xff]
        %v233 = vld [vmem:[%s1 + $0x8] sm:$0xff]
        %v234 = vld [vmem:[%s1 + $0x10] sm:$0xff]
        %v235 = vld [vmem:[%s1 + $0x18] sm:$0xff]
        %237 = vset.pattern.permute.xlu0 0
        %238 = vperm.xlu0 %237, %v232
        %v239 = vpop.permute.xlu0 %238
        %242 = vset.pattern.permute.xlu0 0
        %243 = vperm.xlu0 %242, %v233
        %v244 = vpop.permute.xlu0 %243
        %247 = vset.pattern.permute.xlu0 0
        %248 = vperm.xlu0 %247, %v234
        %v249 = vpop.permute.xlu0 %248
        %252 = vset.pattern.permute.xlu0 0
        %253 = vperm.xlu0 %252, %v235
        %v254 = vpop.permute.xlu0 %253
        %v257 = vlaneseq
        %v258 = vshrl.u32 %v257, 7
        %v259 = vsub.s32 0, %v258
        %v260 = vrot.slane %v231, %v259
        %v261 = vlaneseq
        %v262 = vshrl.u32 %v261, 7
        %v263 = vsub.s32 1, %v262
        %v264 = vrot.slane %v231, %v263
        %v265 = vlaneseq
        %v266 = vshrl.u32 %v265, 7
        %v267 = vsub.s32 2, %v266
        %v268 = vrot.slane %v231, %v267
        %v269 = vlaneseq
        %v270 = vshrl.u32 %v269, 7
        %v271 = vsub.s32 3, %v270
        %v272 = vrot.slane %v231, %v271
        %v273 = vlaneseq
        %v274 = vshrl.u32 %v273, 7
        %v275 = vsub.s32 4, %v274
        %v276 = vrot.slane %v231, %v275
        %v277 = vlaneseq
        %v278 = vshrl.u32 %v277, 7
        %v279 = vsub.s32 5, %v278
        %v280 = vrot.slane %v231, %v279
        %v281 = vlaneseq
        %v282 = vshrl.u32 %v281, 7
        %v283 = vsub.s32 6, %v282
        %v284 = vrot.slane %v231, %v283
        %v285 = vlaneseq
        %v286 = vshrl.u32 %v285, 7
        %v287 = vsub.s32 7, %v286
        %v288 = vrot.slane %v231, %v287
        %v297 = vmul.f32 %v239, %v260
        %v298 = vmul.f32 %v239, %v264
        %v299 = vmul.f32 %v239, %v268
        %v300 = vmul.f32 %v239, %v272
        %v301 = vmul.f32 %v239, %v276
        %v302 = vmul.f32 %v239, %v280
        %v303 = vmul.f32 %v239, %v284
        %v304 = vmul.f32 %v239, %v288
        %v305 = vmul.f32 %v244, %v260
        %v306 = vmul.f32 %v244, %v264
        %v307 = vmul.f32 %v244, %v268
        %v308 = vmul.f32 %v244, %v272
        %v309 = vmul.f32 %v244, %v276
        %v310 = vmul.f32 %v244, %v280
        %v311 = vmul.f32 %v244, %v284
        %v312 = vmul.f32 %v244, %v288
        %v313 = vmul.f32 %v249, %v260
        %v314 = vmul.f32 %v249, %v264
        %v315 = vmul.f32 %v249, %v268
        %v316 = vmul.f32 %v249, %v272
        %v317 = vmul.f32 %v249, %v276
        %v318 = vmul.f32 %v249, %v280
        %v319 = vmul.f32 %v249, %v284
        %v320 = vmul.f32 %v249, %v288
        %v321 = vmul.f32 %v254, %v260
        %v322 = vmul.f32 %v254, %v264
        %v323 = vmul.f32 %v254, %v268
        %v324 = vmul.f32 %v254, %v272
        %v325 = vmul.f32 %v254, %v276
        %v326 = vmul.f32 %v254, %v280
        %v327 = vmul.f32 %v254, %v284
        %v328 = vmul.f32 %v254, %v288
        %329 = vset.pattern.permute.xlu0 1
        %330 = vperm.xlu0 %329, %v232
        %v331 = vpop.permute.xlu0 %330
        %333 = vset.pattern.permute.xlu0 1
        %334 = vperm.xlu0 %333, %v233
        %v335 = vpop.permute.xlu0 %334
        %337 = vset.pattern.permute.xlu0 1
        %338 = vperm.xlu0 %337, %v234
        %v339 = vpop.permute.xlu0 %338
        %341 = vset.pattern.permute.xlu0 1
        %342 = vperm.xlu0 %341, %v235
        %v343 = vpop.permute.xlu0 %342
        %v345 = vadd.f32 %v297, %v331
        %v346 = vadd.f32 %v298, %v331
        %v347 = vadd.f32 %v299, %v331
        %v348 = vadd.f32 %v300, %v331
        %v349 = vadd.f32 %v301, %v331
        %v350 = vadd.f32 %v302, %v331
        %v351 = vadd.f32 %v303, %v331
        %v352 = vadd.f32 %v304, %v331
        %v353 = vadd.f32 %v305, %v335
        %v354 = vadd.f32 %v306, %v335
        %v355 = vadd.f32 %v307, %v335
        %v356 = vadd.f32 %v308, %v335
        %v357 = vadd.f32 %v309, %v335
        %v358 = vadd.f32 %v310, %v335
        %v359 = vadd.f32 %v311, %v335
        %v360 = vadd.f32 %v312, %v335
        %v361 = vadd.f32 %v313, %v339
        %v362 = vadd.f32 %v314, %v339
        %v363 = vadd.f32 %v315, %v339
        %v364 = vadd.f32 %v316, %v339
        %v365 = vadd.f32 %v317, %v339
        %v366 = vadd.f32 %v318, %v339
        %v367 = vadd.f32 %v319, %v339
        %v368 = vadd.f32 %v320, %v339
        %v369 = vadd.f32 %v321, %v343
        %v370 = vadd.f32 %v322, %v343
        %v371 = vadd.f32 %v323, %v343
        %v372 = vadd.f32 %v324, %v343
        %v373 = vadd.f32 %v325, %v343
        %v374 = vadd.f32 %v326, %v343
        %v375 = vadd.f32 %v327, %v343
        %v376 = vadd.f32 %v328, %v343
        %v377 = vtanh.pop %v345
        %v378 = vtanh.pop %v346
        %v379 = vtanh.pop %v347
        %v380 = vtanh.pop %v348
        %v381 = vtanh.pop %v349
        %v382 = vtanh.pop %v350
        %v383 = vtanh.pop %v351
        %v384 = vtanh.pop %v352
        %v385 = vtanh.pop %v353
        %v386 = vtanh.pop %v354
        %v387 = vtanh.pop %v355
        %v388 = vtanh.pop %v356
        %v389 = vtanh.pop %v357
        %v390 = vtanh.pop %v358
        %v391 = vtanh.pop %v359
        %v392 = vtanh.pop %v360
        %v393 = vtanh.pop %v361
        %v394 = vtanh.pop %v362
        %v395 = vtanh.pop %v363
        %v396 = vtanh.pop %v364
        %v397 = vtanh.pop %v365
        %v398 = vtanh.pop %v366
        %v399 = vtanh.pop %v367
        %v400 = vtanh.pop %v368
        %v401 = vtanh.pop %v369
        %v402 = vtanh.pop %v370
        %v403 = vtanh.pop %v371
        %v404 = vtanh.pop %v372
        %v405 = vtanh.pop %v373
        %v406 = vtanh.pop %v374
        %v407 = vtanh.pop %v375
        %v408 = vtanh.pop %v376
        %v409 = vld [vmem:[%s2] sm:$0xff]
        %v410 = vld [vmem:[%s2 + $0x8] sm:$0xff]
        %v411 = vld [vmem:[%s2 + $0x10] sm:$0xff]
        %v412 = vld [vmem:[%s2 + $0x18] sm:$0xff]
        %413 = vset.pattern.permute.xlu0 2
        %414 = vperm.xlu0 %413, %v232
        %v415 = vpop.permute.xlu0 %414
        %417 = vset.pattern.permute.xlu0 2
        %418 = vperm.xlu0 %417, %v233
        %v419 = vpop.permute.xlu0 %418
        %421 = vset.pattern.permute.xlu0 2
        %422 = vperm.xlu0 %421, %v234
        %v423 = vpop.permute.xlu0 %422
        %425 = vset.pattern.permute.xlu0 2
        %426 = vperm.xlu0 %425, %v235
        %v427 = vpop.permute.xlu0 %426
        %vm429 = vcmask 261120
        %v431 = vsel %vm429, %v409, 0
        %v434 = vsel %vm429, %v410, 0
        %v437 = vsel %vm429, %v411, 0
        %v440 = vsel %vm429, %v412, 0
        %442 = vmatprep.subr.mxu0 0.0
        %443 = vmatpush1.msra.mxu0 0.0
        %444 = vmatprep.subr.mxu0 0.0
        %445 = vmatpush1.msra.mxu0 0.0
        %446 = vmatprep.subr.mxu0 0.0
        %447 = vmatpush1.msra.mxu0 0.0
        %448 = vmatprep.subr.mxu0 0.0
        %449 = vmatpush1.msra.mxu0 0.0
        %450 = vmatprep.subr.mxu0 0.0
        %451 = vmatpush1.msra.mxu0 0.0
        %452 = vmatprep.subr.mxu0 0.0
        %453 = vmatpush1.msra.mxu0 0.0
        %454 = vmatprep.subr.mxu0 0.0
        %455 = vmatpush1.msra.mxu0 0.0
        %456 = vmatprep.subr.mxu0 0.0
        %457 = vmatpush1.msra.mxu0 0.0
        %458 = vmatprep.subr.mxu0 0.0
        %459 = vmatpush1.msra.mxu0 0.0
        %460 = vmatprep.subr.mxu0 0.0
        %461 = vmatpush1.msra.mxu0 0.0
        %462 = vmatprep.subr.mxu0 0.0
        %463 = vmatpush1.msra.mxu0 0.0
        %464 = vmatprep.subr.mxu0 0.0
        %465 = vmatpush1.msra.mxu0 0.0
        %466 = vmatprep.subr.mxu0 %v402
        %467 = vmatpush1.msra.mxu0 %v401
        %468 = vmatprep.subr.mxu0 %v394
        %469 = vmatpush1.msra.mxu0 %v393
        %470 = vmatprep.subr.mxu0 %v386
        %471 = vmatpush1.msra.mxu0 %v385
        %472 = vmatprep.subr.mxu0 %v378
        %473 = vmatpush1.msra.mxu0 %v377
        %474 = vmatprep.subr.mxu0 0.0
        %475 = vmatpush2.msra.mxu0 0.0
        %476 = vmatprep.subr.mxu0 0.0
        %477 = vmatpush2.msra.mxu0 0.0
        %478 = vmatprep.subr.mxu0 0.0
        %479 = vmatpush2.msra.mxu0 0.0
        %480 = vmatprep.subr.mxu0 0.0
        %481 = vmatpush2.msra.mxu0 0.0
        %482 = vmatprep.subr.mxu0 0.0
        %483 = vmatpush2.msra.mxu0 0.0
        %484 = vmatprep.subr.mxu0 0.0
        %485 = vmatpush2.msra.mxu0 0.0
        %486 = vmatprep.subr.mxu0 0.0
        %487 = vmatpush2.msra.mxu0 0.0
        %488 = vmatprep.subr.mxu0 0.0
        %489 = vmatpush2.msra.mxu0 0.0
        %490 = vmatprep.subr.mxu0 0.0
        %491 = vmatpush2.msra.mxu0 0.0
        %492 = vmatprep.subr.mxu0 0.0
        %493 = vmatpush2.msra.mxu0 0.0
        %494 = vmatprep.subr.mxu0 0.0
        %495 = vmatpush2.msra.mxu0 0.0
        %496 = vmatprep.subr.mxu0 0.0
        %497 = vmatpush2.msra.mxu0 0.0
        %498 = vmatprep.subr.mxu0 0.0
        %499 = vmatpush2.msra.mxu0 0.0
        %500 = vmatprep.subr.mxu0 0.0
        %501 = vmatpush2.msra.mxu0 0.0
        %502 = vmatprep.subr.mxu0 0.0
        %503 = vmatpush2.msra.mxu0 0.0
        %504 = vmatprep.subr.mxu0 0.0
        %505 = vmatpush2.msra.mxu0 0.0
        %506 = vmatprep.mubr.f32.mxu0 0.0
        %507 = vmatmul.mubr.f32.gmra.mxu0 %v431
        %v508 = vpop.f32.mrf.mxu0
        %v509 = vadd.f32 %v415, %v508
        %v510 = vpop.f32.mrf.mxu0
        %v511 = vadd.f32 %v415, %v510
        %512 = vmatprep.mubr.f32.mxu0 0.0
        %513 = vmatmul.mubr.f32.gmra.mxu0 %v434
        %v514 = vpop.f32.mrf.mxu0
        %v515 = vadd.f32 %v419, %v514
        %v516 = vpop.f32.mrf.mxu0
        %v517 = vadd.f32 %v419, %v516
        %518 = vmatprep.mubr.f32.mxu0 0.0
        %519 = vmatmul.mubr.f32.gmra.mxu0 %v437
        %v520 = vpop.f32.mrf.mxu0
        %v521 = vadd.f32 %v423, %v520
        %v522 = vpop.f32.mrf.mxu0
        %v523 = vadd.f32 %v423, %v522
        %524 = vmatprep.mubr.f32.mxu0 0.0
        %525 = vmatmul.mubr.f32.gmra.mxu0 %v440
        %v526 = vpop.f32.mrf.mxu0
        %v527 = vadd.f32 %v427, %v526
        %v528 = vpop.f32.mrf.mxu0
        %v529 = vadd.f32 %v427, %v528
        %530 = vdwg.mxu0
        %531 = vmatprep.subr.mxu0 0.0
        %532 = vmatpush1.msra.mxu0 0.0
        %533 = vmatprep.subr.mxu0 0.0
        %534 = vmatpush1.msra.mxu0 0.0
        %535 = vmatprep.subr.mxu0 0.0
        %536 = vmatpush1.msra.mxu0 0.0
        %537 = vmatprep.subr.mxu0 0.0
        %538 = vmatpush1.msra.mxu0 0.0
        %539 = vmatprep.subr.mxu0 0.0
        %540 = vmatpush1.msra.mxu0 0.0
        %541 = vmatprep.subr.mxu0 0.0
        %542 = vmatpush1.msra.mxu0 0.0
        %543 = vmatprep.subr.mxu0 0.0
        %544 = vmatpush1.msra.mxu0 0.0
        %545 = vmatprep.subr.mxu0 0.0
        %546 = vmatpush1.msra.mxu0 0.0
        %547 = vmatprep.subr.mxu0 0.0
        %548 = vmatpush1.msra.mxu0 0.0
        %549 = vmatprep.subr.mxu0 0.0
        %550 = vmatpush1.msra.mxu0 0.0
        %551 = vmatprep.subr.mxu0 0.0
        %552 = vmatpush1.msra.mxu0 0.0
        %553 = vmatprep.subr.mxu0 0.0
        %554 = vmatpush1.msra.mxu0 0.0
        %555 = vmatprep.subr.mxu0 %v404
        %556 = vmatpush1.msra.mxu0 %v403
        %557 = vmatprep.subr.mxu0 %v396
        %558 = vmatpush1.msra.mxu0 %v395
        %559 = vmatprep.subr.mxu0 %v388
        %560 = vmatpush1.msra.mxu0 %v387
        %561 = vmatprep.subr.mxu0 %v380
        %562 = vmatpush1.msra.mxu0 %v379
        %563 = vmatprep.subr.mxu0 0.0
        %564 = vmatpush2.msra.mxu0 0.0
        %565 = vmatprep.subr.mxu0 0.0
        %566 = vmatpush2.msra.mxu0 0.0
        %567 = vmatprep.subr.mxu0 0.0
        %568 = vmatpush2.msra.mxu0 0.0
        %569 = vmatprep.subr.mxu0 0.0
        %570 = vmatpush2.msra.mxu0 0.0
        %571 = vmatprep.subr.mxu0 0.0
        %572 = vmatpush2.msra.mxu0 0.0
        %573 = vmatprep.subr.mxu0 0.0
        %574 = vmatpush2.msra.mxu0 0.0
        %575 = vmatprep.subr.mxu0 0.0
        %576 = vmatpush2.msra.mxu0 0.0
        %577 = vmatprep.subr.mxu0 0.0
        %578 = vmatpush2.msra.mxu0 0.0
        %579 = vmatprep.subr.mxu0 0.0
        %580 = vmatpush2.msra.mxu0 0.0
        %581 = vmatprep.subr.mxu0 0.0
        %582 = vmatpush2.msra.mxu0 0.0
        %583 = vmatprep.subr.mxu0 0.0
        %584 = vmatpush2.msra.mxu0 0.0
        %585 = vmatprep.subr.mxu0 0.0
        %586 = vmatpush2.msra.mxu0 0.0
        %587 = vmatprep.subr.mxu0 0.0
        %588 = vmatpush2.msra.mxu0 0.0
        %589 = vmatprep.subr.mxu0 0.0
        %590 = vmatpush2.msra.mxu0 0.0
        %591 = vmatprep.subr.mxu0 0.0
        %592 = vmatpush2.msra.mxu0 0.0
        %593 = vmatprep.subr.mxu0 0.0
        %594 = vmatpush2.msra.mxu0 0.0
        %595 = vmatprep.mubr.f32.mxu0 0.0
        %596 = vmatmul.mubr.f32.gmra.mxu0 %v431
        %v597 = vpop.f32.mrf.mxu0
        %v598 = vadd.f32 %v415, %v597
        %v599 = vpop.f32.mrf.mxu0
        %v600 = vadd.f32 %v415, %v599
        %601 = vmatprep.mubr.f32.mxu0 0.0
        %602 = vmatmul.mubr.f32.gmra.mxu0 %v434
        %v603 = vpop.f32.mrf.mxu0
        %v604 = vadd.f32 %v419, %v603
        %v605 = vpop.f32.mrf.mxu0
        %v606 = vadd.f32 %v419, %v605
        %607 = vmatprep.mubr.f32.mxu0 0.0
        %608 = vmatmul.mubr.f32.gmra.mxu0 %v437
        %v609 = vpop.f32.mrf.mxu0
        %v610 = vadd.f32 %v423, %v609
        %v611 = vpop.f32.mrf.mxu0
        %v612 = vadd.f32 %v423, %v611
        %613 = vmatprep.mubr.f32.mxu0 0.0
        %614 = vmatmul.mubr.f32.gmra.mxu0 %v440
        %v615 = vpop.f32.mrf.mxu0
        %v616 = vadd.f32 %v427, %v615
        %v617 = vpop.f32.mrf.mxu0
        %v618 = vadd.f32 %v427, %v617
        %619 = vdwg.mxu0
        %620 = vmatprep.subr.mxu0 0.0
        %621 = vmatpush1.msra.mxu0 0.0
        %622 = vmatprep.subr.mxu0 0.0
        %623 = vmatpush1.msra.mxu0 0.0
        %624 = vmatprep.subr.mxu0 0.0
        %625 = vmatpush1.msra.mxu0 0.0
        %626 = vmatprep.subr.mxu0 0.0
        %627 = vmatpush1.msra.mxu0 0.0
        %628 = vmatprep.subr.mxu0 0.0
        %629 = vmatpush1.msra.mxu0 0.0
        %630 = vmatprep.subr.mxu0 0.0
        %631 = vmatpush1.msra.mxu0 0.0
        %632 = vmatprep.subr.mxu0 0.0
        %633 = vmatpush1.msra.mxu0 0.0
        %634 = vmatprep.subr.mxu0 0.0
        %635 = vmatpush1.msra.mxu0 0.0
        %636 = vmatprep.subr.mxu0 0.0
        %637 = vmatpush1.msra.mxu0 0.0
        %638 = vmatprep.subr.mxu0 0.0
        %639 = vmatpush1.msra.mxu0 0.0
        %640 = vmatprep.subr.mxu0 0.0
        %641 = vmatpush1.msra.mxu0 0.0
        %642 = vmatprep.subr.mxu0 0.0
        %643 = vmatpush1.msra.mxu0 0.0
        %644 = vmatprep.subr.mxu0 %v406
        %645 = vmatpush1.msra.mxu0 %v405
        %646 = vmatprep.subr.mxu0 %v398
        %647 = vmatpush1.msra.mxu0 %v397
        %648 = vmatprep.subr.mxu0 %v390
        %649 = vmatpush1.msra.mxu0 %v389
        %650 = vmatprep.subr.mxu0 %v382
        %651 = vmatpush1.msra.mxu0 %v381
        %652 = vmatprep.subr.mxu0 0.0
        %653 = vmatpush2.msra.mxu0 0.0
        %654 = vmatprep.subr.mxu0 0.0
        %655 = vmatpush2.msra.mxu0 0.0
        %656 = vmatprep.subr.mxu0 0.0
        %657 = vmatpush2.msra.mxu0 0.0
        %658 = vmatprep.subr.mxu0 0.0
        %659 = vmatpush2.msra.mxu0 0.0
        %660 = vmatprep.subr.mxu0 0.0
        %661 = vmatpush2.msra.mxu0 0.0
        %662 = vmatprep.subr.mxu0 0.0
        %663 = vmatpush2.msra.mxu0 0.0
        %664 = vmatprep.subr.mxu0 0.0
        %665 = vmatpush2.msra.mxu0 0.0
        %666 = vmatprep.subr.mxu0 0.0
        %667 = vmatpush2.msra.mxu0 0.0
        %668 = vmatprep.subr.mxu0 0.0
        %669 = vmatpush2.msra.mxu0 0.0
        %670 = vmatprep.subr.mxu0 0.0
        %671 = vmatpush2.msra.mxu0 0.0
        %672 = vmatprep.subr.mxu0 0.0
        %673 = vmatpush2.msra.mxu0 0.0
        %674 = vmatprep.subr.mxu0 0.0
        %675 = vmatpush2.msra.mxu0 0.0
        %676 = vmatprep.subr.mxu0 0.0
        %677 = vmatpush2.msra.mxu0 0.0
        %678 = vmatprep.subr.mxu0 0.0
        %679 = vmatpush2.msra.mxu0 0.0
        %680 = vmatprep.subr.mxu0 0.0
        %681 = vmatpush2.msra.mxu0 0.0
        %682 = vmatprep.subr.mxu0 0.0
        %683 = vmatpush2.msra.mxu0 0.0
        %684 = vmatprep.mubr.f32.mxu0 0.0
        %685 = vmatmul.mubr.f32.gmra.mxu0 %v431
        %v686 = vpop.f32.mrf.mxu0
        %v687 = vadd.f32 %v415, %v686
        %v688 = vpop.f32.mrf.mxu0
        %v689 = vadd.f32 %v415, %v688
        %690 = vmatprep.mubr.f32.mxu0 0.0
        %691 = vmatmul.mubr.f32.gmra.mxu0 %v434
        %v692 = vpop.f32.mrf.mxu0
        %v693 = vadd.f32 %v419, %v692
        %v694 = vpop.f32.mrf.mxu0
        %v695 = vadd.f32 %v419, %v694
        %696 = vmatprep.mubr.f32.mxu0 0.0
        %697 = vmatmul.mubr.f32.gmra.mxu0 %v437
        %v698 = vpop.f32.mrf.mxu0
        %v699 = vadd.f32 %v423, %v698
        %v700 = vpop.f32.mrf.mxu0
        %v701 = vadd.f32 %v423, %v700
        %702 = vmatprep.mubr.f32.mxu0 0.0
        %703 = vmatmul.mubr.f32.gmra.mxu0 %v440
        %v704 = vpop.f32.mrf.mxu0
        %v705 = vadd.f32 %v427, %v704
        %v706 = vpop.f32.mrf.mxu0
        %v707 = vadd.f32 %v427, %v706
        %708 = vdwg.mxu0
        %709 = vmatprep.subr.mxu0 0.0
        %710 = vmatpush1.msra.mxu0 0.0
        %711 = vmatprep.subr.mxu0 0.0
        %712 = vmatpush1.msra.mxu0 0.0
        %713 = vmatprep.subr.mxu0 0.0
        %714 = vmatpush1.msra.mxu0 0.0
        %715 = vmatprep.subr.mxu0 0.0
        %716 = vmatpush1.msra.mxu0 0.0
        %717 = vmatprep.subr.mxu0 0.0
        %718 = vmatpush1.msra.mxu0 0.0
        %719 = vmatprep.subr.mxu0 0.0
        %720 = vmatpush1.msra.mxu0 0.0
        %721 = vmatprep.subr.mxu0 0.0
        %722 = vmatpush1.msra.mxu0 0.0
        %723 = vmatprep.subr.mxu0 0.0
        %724 = vmatpush1.msra.mxu0 0.0
        %725 = vmatprep.subr.mxu0 0.0
        %726 = vmatpush1.msra.mxu0 0.0
        %727 = vmatprep.subr.mxu0 0.0
        %728 = vmatpush1.msra.mxu0 0.0
        %729 = vmatprep.subr.mxu0 0.0
        %730 = vmatpush1.msra.mxu0 0.0
        %731 = vmatprep.subr.mxu0 0.0
        %732 = vmatpush1.msra.mxu0 0.0
        %733 = vmatprep.subr.mxu0 %v408
        %734 = vmatpush1.msra.mxu0 %v407
        %735 = vmatprep.subr.mxu0 %v400
        %736 = vmatpush1.msra.mxu0 %v399
        %737 = vmatprep.subr.mxu0 %v392
        %738 = vmatpush1.msra.mxu0 %v391
        %739 = vmatprep.subr.mxu0 %v384
        %740 = vmatpush1.msra.mxu0 %v383
        %741 = vmatprep.subr.mxu0 0.0
        %742 = vmatpush2.msra.mxu0 0.0
        %743 = vmatprep.subr.mxu0 0.0
        %744 = vmatpush2.msra.mxu0 0.0
        %745 = vmatprep.subr.mxu0 0.0
        %746 = vmatpush2.msra.mxu0 0.0
        %747 = vmatprep.subr.mxu0 0.0
        %748 = vmatpush2.msra.mxu0 0.0
        %749 = vmatprep.subr.mxu0 0.0
        %750 = vmatpush2.msra.mxu0 0.0
        %751 = vmatprep.subr.mxu0 0.0
        %752 = vmatpush2.msra.mxu0 0.0
        %753 = vmatprep.subr.mxu0 0.0
        %754 = vmatpush2.msra.mxu0 0.0
        %755 = vmatprep.subr.mxu0 0.0
        %756 = vmatpush2.msra.mxu0 0.0
        %757 = vmatprep.subr.mxu0 0.0
        %758 = vmatpush2.msra.mxu0 0.0
        %759 = vmatprep.subr.mxu0 0.0
        %760 = vmatpush2.msra.mxu0 0.0
        %761 = vmatprep.subr.mxu0 0.0
        %762 = vmatpush2.msra.mxu0 0.0
        %763 = vmatprep.subr.mxu0 0.0
        %764 = vmatpush2.msra.mxu0 0.0
        %765 = vmatprep.subr.mxu0 0.0
        %766 = vmatpush2.msra.mxu0 0.0
        %767 = vmatprep.subr.mxu0 0.0
        %768 = vmatpush2.msra.mxu0 0.0
        %769 = vmatprep.subr.mxu0 0.0
        %770 = vmatpush2.msra.mxu0 0.0
        %771 = vmatprep.subr.mxu0 0.0
        %772 = vmatpush2.msra.mxu0 0.0
        %773 = vmatprep.mubr.f32.mxu0 0.0
        %774 = vmatmul.mubr.f32.gmra.mxu0 %v431
        %v775 = vpop.f32.mrf.mxu0
        %v776 = vadd.f32 %v415, %v775
        %v777 = vpop.f32.mrf.mxu0
        %v778 = vadd.f32 %v415, %v777
        %779 = vmatprep.mubr.f32.mxu0 0.0
        %780 = vmatmul.mubr.f32.gmra.mxu0 %v434
        %v781 = vpop.f32.mrf.mxu0
        %v782 = vadd.f32 %v419, %v781
        %v783 = vpop.f32.mrf.mxu0
        %v784 = vadd.f32 %v419, %v783
        %785 = vmatprep.mubr.f32.mxu0 0.0
        %786 = vmatmul.mubr.f32.gmra.mxu0 %v437
        %v787 = vpop.f32.mrf.mxu0
        %v788 = vadd.f32 %v423, %v787
        %v789 = vpop.f32.mrf.mxu0
        %v790 = vadd.f32 %v423, %v789
        %791 = vmatprep.mubr.f32.mxu0 0.0
        %792 = vmatmul.mubr.f32.gmra.mxu0 %v440
        %v793 = vpop.f32.mrf.mxu0
        %v794 = vadd.f32 %v427, %v793
        %v795 = vpop.f32.mrf.mxu0
        %v796 = vadd.f32 %v427, %v795
        %797 = vdwg.mxu0
        %v798 = vtanh.pop %v509
        %v799 = vtanh.pop %v511
        %v800 = vtanh.pop %v598
        %v801 = vtanh.pop %v600
        %v802 = vtanh.pop %v687
        %v803 = vtanh.pop %v689
        %v804 = vtanh.pop %v776
        %v805 = vtanh.pop %v778
        %v806 = vtanh.pop %v515
        %v807 = vtanh.pop %v517
        %v808 = vtanh.pop %v604
        %v809 = vtanh.pop %v606
        %v810 = vtanh.pop %v693
        %v811 = vtanh.pop %v695
        %v812 = vtanh.pop %v782
        %v813 = vtanh.pop %v784
        %v814 = vtanh.pop %v521
        %v815 = vtanh.pop %v523
        %v816 = vtanh.pop %v610
        %v817 = vtanh.pop %v612
        %v818 = vtanh.pop %v699
        %v819 = vtanh.pop %v701
        %v820 = vtanh.pop %v788
        %v821 = vtanh.pop %v790
        %v822 = vtanh.pop %v527
        %v823 = vtanh.pop %v529
        %v824 = vtanh.pop %v616
        %v825 = vtanh.pop %v618
        %v826 = vtanh.pop %v705
        %v827 = vtanh.pop %v707
        %v828 = vtanh.pop %v794
        %v829 = vtanh.pop %v796
        %v830 = vld [vmem:[#allocation5] sm:$0xff]
        %v831 = vld [vmem:[#allocation5 + $0x8] sm:$0xff]
        %v832 = vld [vmem:[#allocation5 + $0x10] sm:$0xff]
        %v833 = vld [vmem:[#allocation5 + $0x18] sm:$0xff]
        %834 = vset.pattern.permute.xlu0 3
        %835 = vperm.xlu0 %834, %v232
        %v836 = vpop.permute.xlu0 %835
        %838 = vset.pattern.permute.xlu0 3
        %839 = vperm.xlu0 %838, %v233
        %v840 = vpop.permute.xlu0 %839
        %842 = vset.pattern.permute.xlu0 3
        %843 = vperm.xlu0 %842, %v234
        %v844 = vpop.permute.xlu0 %843
        %846 = vset.pattern.permute.xlu0 3
        %847 = vperm.xlu0 %846, %v235
        %v848 = vpop.permute.xlu0 %847
        %v851 = vsel %vm429, %v830, 0
        %v854 = vsel %vm429, %v831, 0
        %v857 = vsel %vm429, %v832, 0
        %v860 = vsel %vm429, %v833, 0
        %862 = vmatprep.subr.mxu0 0.0
        %863 = vmatpush1.msra.mxu0 0.0
        %864 = vmatprep.subr.mxu0 0.0
        %865 = vmatpush1.msra.mxu0 0.0
        %866 = vmatprep.subr.mxu0 0.0
        %867 = vmatpush1.msra.mxu0 0.0
        %868 = vmatprep.subr.mxu0 0.0
        %869 = vmatpush1.msra.mxu0 0.0
        %870 = vmatprep.subr.mxu0 0.0
        %871 = vmatpush1.msra.mxu0 0.0
        %872 = vmatprep.subr.mxu0 0.0
        %873 = vmatpush1.msra.mxu0 0.0
        %874 = vmatprep.subr.mxu0 0.0
        %875 = vmatpush1.msra.mxu0 0.0
        %876 = vmatprep.subr.mxu0 0.0
        %877 = vmatpush1.msra.mxu0 0.0
        %878 = vmatprep.subr.mxu0 0.0
        %879 = vmatpush1.msra.mxu0 0.0
        %880 = vmatprep.subr.mxu0 0.0
        %881 = vmatpush1.msra.mxu0 0.0
        %882 = vmatprep.subr.mxu0 0.0
        %883 = vmatpush1.msra.mxu0 0.0
        %884 = vmatprep.subr.mxu0 0.0
        %885 = vmatpush1.msra.mxu0 0.0
        %886 = vmatprep.subr.mxu0 %v823
        %887 = vmatpush1.msra.mxu0 %v822
        %888 = vmatprep.subr.mxu0 %v815
        %889 = vmatpush1.msra.mxu0 %v814
        %890 = vmatprep.subr.mxu0 %v807
        %891 = vmatpush1.msra.mxu0 %v806
        %892 = vmatprep.subr.mxu0 %v799
        %893 = vmatpush1.msra.mxu0 %v798
        %894 = vmatprep.subr.mxu0 0.0
        %895 = vmatpush2.msra.mxu0 0.0
        %896 = vmatprep.subr.mxu0 0.0
        %897 = vmatpush2.msra.mxu0 0.0
        %898 = vmatprep.subr.mxu0 0.0
        %899 = vmatpush2.msra.mxu0 0.0
        %900 = vmatprep.subr.mxu0 0.0
        %901 = vmatpush2.msra.mxu0 0.0
        %902 = vmatprep.subr.mxu0 0.0
        %903 = vmatpush2.msra.mxu0 0.0
        %904 = vmatprep.subr.mxu0 0.0
        %905 = vmatpush2.msra.mxu0 0.0
        %906 = vmatprep.subr.mxu0 0.0
        %907 = vmatpush2.msra.mxu0 0.0
        %908 = vmatprep.subr.mxu0 0.0
        %909 = vmatpush2.msra.mxu0 0.0
        %910 = vmatprep.subr.mxu0 0.0
        %911 = vmatpush2.msra.mxu0 0.0
        %912 = vmatprep.subr.mxu0 0.0
        %913 = vmatpush2.msra.mxu0 0.0
        %914 = vmatprep.subr.mxu0 0.0
        %915 = vmatpush2.msra.mxu0 0.0
        %916 = vmatprep.subr.mxu0 0.0
        %917 = vmatpush2.msra.mxu0 0.0
        %918 = vmatprep.subr.mxu0 0.0
        %919 = vmatpush2.msra.mxu0 0.0
        %920 = vmatprep.subr.mxu0 0.0
        %921 = vmatpush2.msra.mxu0 0.0
        %922 = vmatprep.subr.mxu0 0.0
        %923 = vmatpush2.msra.mxu0 0.0
        %924 = vmatprep.subr.mxu0 0.0
        %925 = vmatpush2.msra.mxu0 0.0
        %926 = vmatprep.mubr.f32.mxu0 0.0
        %927 = vmatmul.mubr.f32.gmra.mxu0 %v851
        %v928 = vpop.f32.mrf.mxu0
        %v929 = vadd.f32 %v836, %v928
        %v930 = vpop.f32.mrf.mxu0
        %v931 = vadd.f32 %v836, %v930
        %932 = vmatprep.mubr.f32.mxu0 0.0
        %933 = vmatmul.mubr.f32.gmra.mxu0 %v854
        %v934 = vpop.f32.mrf.mxu0
        %v935 = vadd.f32 %v840, %v934
        %v936 = vpop.f32.mrf.mxu0
        %v937 = vadd.f32 %v840, %v936
        %938 = vmatprep.mubr.f32.mxu0 0.0
        %939 = vmatmul.mubr.f32.gmra.mxu0 %v857
        %v940 = vpop.f32.mrf.mxu0
        %v941 = vadd.f32 %v844, %v940
        %v942 = vpop.f32.mrf.mxu0
        %v943 = vadd.f32 %v844, %v942
        %944 = vmatprep.mubr.f32.mxu0 0.0
        %945 = vmatmul.mubr.f32.gmra.mxu0 %v860
        %v946 = vpop.f32.mrf.mxu0
        %v947 = vadd.f32 %v848, %v946
        %v948 = vpop.f32.mrf.mxu0
        %v949 = vadd.f32 %v848, %v948
        %950 = vdwg.mxu0
        %951 = vmatprep.subr.mxu0 0.0
        %952 = vmatpush1.msra.mxu0 0.0
        %953 = vmatprep.subr.mxu0 0.0
        %954 = vmatpush1.msra.mxu0 0.0
        %955 = vmatprep.subr.mxu0 0.0
        %956 = vmatpush1.msra.mxu0 0.0
        %957 = vmatprep.subr.mxu0 0.0
        %958 = vmatpush1.msra.mxu0 0.0
        %959 = vmatprep.subr.mxu0 0.0
        %960 = vmatpush1.msra.mxu0 0.0
        %961 = vmatprep.subr.mxu0 0.0
        %962 = vmatpush1.msra.mxu0 0.0
        %963 = vmatprep.subr.mxu0 0.0
        %964 = vmatpush1.msra.mxu0 0.0
        %965 = vmatprep.subr.mxu0 0.0
        %966 = vmatpush1.msra.mxu0 0.0
        %967 = vmatprep.subr.mxu0 0.0
        %968 = vmatpush1.msra.mxu0 0.0
        %969 = vmatprep.subr.mxu0 0.0
        %970 = vmatpush1.msra.mxu0 0.0
        %971 = vmatprep.subr.mxu0 0.0
        %972 = vmatpush1.msra.mxu0 0.0
        %973 = vmatprep.subr.mxu0 0.0
        %974 = vmatpush1.msra.mxu0 0.0
        %975 = vmatprep.subr.mxu0 %v825
        %976 = vmatpush1.msra.mxu0 %v824
        %977 = vmatprep.subr.mxu0 %v817
        %978 = vmatpush1.msra.mxu0 %v816
        %979 = vmatprep.subr.mxu0 %v809
        %980 = vmatpush1.msra.mxu0 %v808
        %981 = vmatprep.subr.mxu0 %v801
        %982 = vmatpush1.msra.mxu0 %v800
        %983 = vmatprep.subr.mxu0 0.0
        %984 = vmatpush2.msra.mxu0 0.0
        %985 = vmatprep.subr.mxu0 0.0
        %986 = vmatpush2.msra.mxu0 0.0
        %987 = vmatprep.subr.mxu0 0.0
        %988 = vmatpush2.msra.mxu0 0.0
        %989 = vmatprep.subr.mxu0 0.0
        %990 = vmatpush2.msra.mxu0 0.0
        %991 = vmatprep.subr.mxu0 0.0
        %992 = vmatpush2.msra.mxu0 0.0
        %993 = vmatprep.subr.mxu0 0.0
        %994 = vmatpush2.msra.mxu0 0.0
        %995 = vmatprep.subr.mxu0 0.0
        %996 = vmatpush2.msra.mxu0 0.0
        %997 = vmatprep.subr.mxu0 0.0
        %998 = vmatpush2.msra.mxu0 0.0
        %999 = vmatprep.subr.mxu0 0.0
        %1000 = vmatpush2.msra.mxu0 0.0
        %1001 = vmatprep.subr.mxu0 0.0
        %1002 = vmatpush2.msra.mxu0 0.0
        %1003 = vmatprep.subr.mxu0 0.0
        %1004 = vmatpush2.msra.mxu0 0.0
        %1005 = vmatprep.subr.mxu0 0.0
        %1006 = vmatpush2.msra.mxu0 0.0
        %1007 = vmatprep.subr.mxu0 0.0
        %1008 = vmatpush2.msra.mxu0 0.0
        %1009 = vmatprep.subr.mxu0 0.0
        %1010 = vmatpush2.msra.mxu0 0.0
        %1011 = vmatprep.subr.mxu0 0.0
        %1012 = vmatpush2.msra.mxu0 0.0
        %1013 = vmatprep.subr.mxu0 0.0
        %1014 = vmatpush2.msra.mxu0 0.0
        %1015 = vmatprep.mubr.f32.mxu0 0.0
        %1016 = vmatmul.mubr.f32.gmra.mxu0 %v851
        %v1017 = vpop.f32.mrf.mxu0
        %v1018 = vadd.f32 %v836, %v1017
        %v1019 = vpop.f32.mrf.mxu0
        %v1020 = vadd.f32 %v836, %v1019
        %1021 = vmatprep.mubr.f32.mxu0 0.0
        %1022 = vmatmul.mubr.f32.gmra.mxu0 %v854
        %v1023 = vpop.f32.mrf.mxu0
        %v1024 = vadd.f32 %v840, %v1023
        %v1025 = vpop.f32.mrf.mxu0
        %v1026 = vadd.f32 %v840, %v1025
        %1027 = vmatprep.mubr.f32.mxu0 0.0
        %1028 = vmatmul.mubr.f32.gmra.mxu0 %v857
        %v1029 = vpop.f32.mrf.mxu0
        %v1030 = vadd.f32 %v844, %v1029
        %v1031 = vpop.f32.mrf.mxu0
        %v1032 = vadd.f32 %v844, %v1031
        %1033 = vmatprep.mubr.f32.mxu0 0.0
        %1034 = vmatmul.mubr.f32.gmra.mxu0 %v860
        %v1035 = vpop.f32.mrf.mxu0
        %v1036 = vadd.f32 %v848, %v1035
        %v1037 = vpop.f32.mrf.mxu0
        %v1038 = vadd.f32 %v848, %v1037
        %1039 = vdwg.mxu0
        %1040 = vmatprep.subr.mxu0 0.0
        %1041 = vmatpush1.msra.mxu0 0.0
        %1042 = vmatprep.subr.mxu0 0.0
        %1043 = vmatpush1.msra.mxu0 0.0
        %1044 = vmatprep.subr.mxu0 0.0
        %1045 = vmatpush1.msra.mxu0 0.0
        %1046 = vmatprep.subr.mxu0 0.0
        %1047 = vmatpush1.msra.mxu0 0.0
        %1048 = vmatprep.subr.mxu0 0.0
        %1049 = vmatpush1.msra.mxu0 0.0
        %1050 = vmatprep.subr.mxu0 0.0
        %1051 = vmatpush1.msra.mxu0 0.0
        %1052 = vmatprep.subr.mxu0 0.0
        %1053 = vmatpush1.msra.mxu0 0.0
        %1054 = vmatprep.subr.mxu0 0.0
        %1055 = vmatpush1.msra.mxu0 0.0
        %1056 = vmatprep.subr.mxu0 0.0
        %1057 = vmatpush1.msra.mxu0 0.0
        %1058 = vmatprep.subr.mxu0 0.0
        %1059 = vmatpush1.msra.mxu0 0.0
        %1060 = vmatprep.subr.mxu0 0.0
        %1061 = vmatpush1.msra.mxu0 0.0
        %1062 = vmatprep.subr.mxu0 0.0
        %1063 = vmatpush1.msra.mxu0 0.0
        %1064 = vmatprep.subr.mxu0 %v827
        %1065 = vmatpush1.msra.mxu0 %v826
        %1066 = vmatprep.subr.mxu0 %v819
        %1067 = vmatpush1.msra.mxu0 %v818
        %1068 = vmatprep.subr.mxu0 %v811
        %1069 = vmatpush1.msra.mxu0 %v810
        %1070 = vmatprep.subr.mxu0 %v803
        %1071 = vmatpush1.msra.mxu0 %v802
        %1072 = vmatprep.subr.mxu0 0.0
        %1073 = vmatpush2.msra.mxu0 0.0
        %1074 = vmatprep.subr.mxu0 0.0
        %1075 = vmatpush2.msra.mxu0 0.0
        %1076 = vmatprep.subr.mxu0 0.0
        %1077 = vmatpush2.msra.mxu0 0.0
        %1078 = vmatprep.subr.mxu0 0.0
        %1079 = vmatpush2.msra.mxu0 0.0
        %1080 = vmatprep.subr.mxu0 0.0
        %1081 = vmatpush2.msra.mxu0 0.0
        %1082 = vmatprep.subr.mxu0 0.0
        %1083 = vmatpush2.msra.mxu0 0.0
        %1084 = vmatprep.subr.mxu0 0.0
        %1085 = vmatpush2.msra.mxu0 0.0
        %1086 = vmatprep.subr.mxu0 0.0
        %1087 = vmatpush2.msra.mxu0 0.0
        %1088 = vmatprep.subr.mxu0 0.0
        %1089 = vmatpush2.msra.mxu0 0.0
        %1090 = vmatprep.subr.mxu0 0.0
        %1091 = vmatpush2.msra.mxu0 0.0
        %1092 = vmatprep.subr.mxu0 0.0
        %1093 = vmatpush2.msra.mxu0 0.0
        %1094 = vmatprep.subr.mxu0 0.0
        %1095 = vmatpush2.msra.mxu0 0.0
        %1096 = vmatprep.subr.mxu0 0.0
        %1097 = vmatpush2.msra.mxu0 0.0
        %1098 = vmatprep.subr.mxu0 0.0
        %1099 = vmatpush2.msra.mxu0 0.0
        %1100 = vmatprep.subr.mxu0 0.0
        %1101 = vmatpush2.msra.mxu0 0.0
        %1102 = vmatprep.subr.mxu0 0.0
        %1103 = vmatpush2.msra.mxu0 0.0
        %1104 = vmatprep.mubr.f32.mxu0 0.0
        %1105 = vmatmul.mubr.f32.gmra.mxu0 %v851
        %v1106 = vpop.f32.mrf.mxu0
        %v1107 = vadd.f32 %v836, %v1106
        %v1108 = vpop.f32.mrf.mxu0
        %v1109 = vadd.f32 %v836, %v1108
        %1110 = vmatprep.mubr.f32.mxu0 0.0
        %1111 = vmatmul.mubr.f32.gmra.mxu0 %v854
        %v1112 = vpop.f32.mrf.mxu0
        %v1113 = vadd.f32 %v840, %v1112
        %v1114 = vpop.f32.mrf.mxu0
        %v1115 = vadd.f32 %v840, %v1114
        %1116 = vmatprep.mubr.f32.mxu0 0.0
        %1117 = vmatmul.mubr.f32.gmra.mxu0 %v857
        %v1118 = vpop.f32.mrf.mxu0
        %v1119 = vadd.f32 %v844, %v1118
        %v1120 = vpop.f32.mrf.mxu0
        %v1121 = vadd.f32 %v844, %v1120
        %1122 = vmatprep.mubr.f32.mxu0 0.0
        %1123 = vmatmul.mubr.f32.gmra.mxu0 %v860
        %v1124 = vpop.f32.mrf.mxu0
        %v1125 = vadd.f32 %v848, %v1124
        %v1126 = vpop.f32.mrf.mxu0
        %v1127 = vadd.f32 %v848, %v1126
        %1128 = vdwg.mxu0
        %1129 = vmatprep.subr.mxu0 0.0
        %1130 = vmatpush1.msra.mxu0 0.0
        %1131 = vmatprep.subr.mxu0 0.0
        %1132 = vmatpush1.msra.mxu0 0.0
        %1133 = vmatprep.subr.mxu0 0.0
        %1134 = vmatpush1.msra.mxu0 0.0
        %1135 = vmatprep.subr.mxu0 0.0
        %1136 = vmatpush1.msra.mxu0 0.0
        %1137 = vmatprep.subr.mxu0 0.0
        %1138 = vmatpush1.msra.mxu0 0.0
        %1139 = vmatprep.subr.mxu0 0.0
        %1140 = vmatpush1.msra.mxu0 0.0
        %1141 = vmatprep.subr.mxu0 0.0
        %1142 = vmatpush1.msra.mxu0 0.0
        %1143 = vmatprep.subr.mxu0 0.0
        %1144 = vmatpush1.msra.mxu0 0.0
        %1145 = vmatprep.subr.mxu0 0.0
        %1146 = vmatpush1.msra.mxu0 0.0
        %1147 = vmatprep.subr.mxu0 0.0
        %1148 = vmatpush1.msra.mxu0 0.0
        %1149 = vmatprep.subr.mxu0 0.0
        %1150 = vmatpush1.msra.mxu0 0.0
        %1151 = vmatprep.subr.mxu0 0.0
        %1152 = vmatpush1.msra.mxu0 0.0
        %1153 = vmatprep.subr.mxu0 %v829
        %1154 = vmatpush1.msra.mxu0 %v828
        %1155 = vmatprep.subr.mxu0 %v821
        %1156 = vmatpush1.msra.mxu0 %v820
        %1157 = vmatprep.subr.mxu0 %v813
        %1158 = vmatpush1.msra.mxu0 %v812
        %1159 = vmatprep.subr.mxu0 %v805
        %1160 = vmatpush1.msra.mxu0 %v804
        %1161 = vmatprep.subr.mxu0 0.0
        %1162 = vmatpush2.msra.mxu0 0.0
        %1163 = vmatprep.subr.mxu0 0.0
        %1164 = vmatpush2.msra.mxu0 0.0
        %1165 = vmatprep.subr.mxu0 0.0
        %1166 = vmatpush2.msra.mxu0 0.0
        %1167 = vmatprep.subr.mxu0 0.0
        %1168 = vmatpush2.msra.mxu0 0.0
        %1169 = vmatprep.subr.mxu0 0.0
        %1170 = vmatpush2.msra.mxu0 0.0
        %1171 = vmatprep.subr.mxu0 0.0
        %1172 = vmatpush2.msra.mxu0 0.0
        %1173 = vmatprep.subr.mxu0 0.0
        %1174 = vmatpush2.msra.mxu0 0.0
        %1175 = vmatprep.subr.mxu0 0.0
        %1176 = vmatpush2.msra.mxu0 0.0
        %1177 = vmatprep.subr.mxu0 0.0
        %1178 = vmatpush2.msra.mxu0 0.0
        %1179 = vmatprep.subr.mxu0 0.0
        %1180 = vmatpush2.msra.mxu0 0.0
        %1181 = vmatprep.subr.mxu0 0.0
        %1182 = vmatpush2.msra.mxu0 0.0
        %1183 = vmatprep.subr.mxu0 0.0
        %1184 = vmatpush2.msra.mxu0 0.0
        %1185 = vmatprep.subr.mxu0 0.0
        %1186 = vmatpush2.msra.mxu0 0.0
        %1187 = vmatprep.subr.mxu0 0.0
        %1188 = vmatpush2.msra.mxu0 0.0
        %1189 = vmatprep.subr.mxu0 0.0
        %1190 = vmatpush2.msra.mxu0 0.0
        %1191 = vmatprep.subr.mxu0 0.0
        %1192 = vmatpush2.msra.mxu0 0.0
        %1193 = vmatprep.mubr.f32.mxu0 0.0
        %1194 = vmatmul.mubr.f32.gmra.mxu0 %v851
        %v1195 = vpop.f32.mrf.mxu0
        %v1196 = vadd.f32 %v836, %v1195
        %v1197 = vpop.f32.mrf.mxu0
        %v1198 = vadd.f32 %v836, %v1197
        %1199 = vmatprep.mubr.f32.mxu0 0.0
        %1200 = vmatmul.mubr.f32.gmra.mxu0 %v854
        %v1201 = vpop.f32.mrf.mxu0
        %v1202 = vadd.f32 %v840, %v1201
        %v1203 = vpop.f32.mrf.mxu0
        %v1204 = vadd.f32 %v840, %v1203
        %1205 = vmatprep.mubr.f32.mxu0 0.0
        %1206 = vmatmul.mubr.f32.gmra.mxu0 %v857
        %v1207 = vpop.f32.mrf.mxu0
        %v1208 = vadd.f32 %v844, %v1207
        %v1209 = vpop.f32.mrf.mxu0
        %v1210 = vadd.f32 %v844, %v1209
        %1211 = vmatprep.mubr.f32.mxu0 0.0
        %1212 = vmatmul.mubr.f32.gmra.mxu0 %v860
        %v1213 = vpop.f32.mrf.mxu0
        %v1214 = vadd.f32 %v848, %v1213
        %v1215 = vpop.f32.mrf.mxu0
        %v1216 = vadd.f32 %v848, %v1215
        %1217 = vdwg.mxu0
        %v1218 = vtanh.pop %v929
        %v1219 = vtanh.pop %v931
        %v1220 = vtanh.pop %v1018
        %v1221 = vtanh.pop %v1020
        %v1222 = vtanh.pop %v1107
        %v1223 = vtanh.pop %v1109
        %v1224 = vtanh.pop %v1196
        %v1225 = vtanh.pop %v1198
        %v1226 = vtanh.pop %v935
        %v1227 = vtanh.pop %v937
        %v1228 = vtanh.pop %v1024
        %v1229 = vtanh.pop %v1026
        %v1230 = vtanh.pop %v1113
        %v1231 = vtanh.pop %v1115
        %v1232 = vtanh.pop %v1202
        %v1233 = vtanh.pop %v1204
        %v1234 = vtanh.pop %v941
        %v1235 = vtanh.pop %v943
        %v1236 = vtanh.pop %v1030
        %v1237 = vtanh.pop %v1032
        %v1238 = vtanh.pop %v1119
        %v1239 = vtanh.pop %v1121
        %v1240 = vtanh.pop %v1208
        %v1241 = vtanh.pop %v1210
        %v1242 = vtanh.pop %v947
        %v1243 = vtanh.pop %v949
        %v1244 = vtanh.pop %v1036
        %v1245 = vtanh.pop %v1038
        %v1246 = vtanh.pop %v1125
        %v1247 = vtanh.pop %v1127
        %v1248 = vtanh.pop %v1214
        %v1249 = vtanh.pop %v1216
        %1250 = vset.pattern.permute.xlu0 4
        %1251 = vperm.xlu0 %1250, %v232
        %v1252 = vpop.permute.xlu0 %1251
        %1254 = vset.pattern.permute.xlu0 4
        %1255 = vperm.xlu0 %1254, %v233
        %v1256 = vpop.permute.xlu0 %1255
        %1258 = vset.pattern.permute.xlu0 4
        %1259 = vperm.xlu0 %1258, %v234
        %v1260 = vpop.permute.xlu0 %1259
        %1262 = vset.pattern.permute.xlu0 4
        %1263 = vperm.xlu0 %1262, %v235
        %v1264 = vpop.permute.xlu0 %1263
        %v1266 = vmul.f32 %v1252, %v1218
        %v1267 = vmul.f32 %v1252, %v1219
        %v1268 = vmul.f32 %v1252, %v1220
        %v1269 = vmul.f32 %v1252, %v1221
        %v1270 = vmul.f32 %v1252, %v1222
        %v1271 = vmul.f32 %v1252, %v1223
        %v1272 = vmul.f32 %v1252, %v1224
        %v1273 = vmul.f32 %v1252, %v1225
        %v1274 = vmul.f32 %v1256, %v1226
        %v1275 = vmul.f32 %v1256, %v1227
        %v1276 = vmul.f32 %v1256, %v1228
        %v1277 = vmul.f32 %v1256, %v1229
        %v1278 = vmul.f32 %v1256, %v1230
        %v1279 = vmul.f32 %v1256, %v1231
        %v1280 = vmul.f32 %v1256, %v1232
        %v1281 = vmul.f32 %v1256, %v1233
        %v1282 = vmul.f32 %v1260, %v1234
        %v1283 = vmul.f32 %v1260, %v1235
        %v1284 = vmul.f32 %v1260, %v1236
        %v1285 = vmul.f32 %v1260, %v1237
        %v1286 = vmul.f32 %v1260, %v1238
        %v1287 = vmul.f32 %v1260, %v1239
        %v1288 = vmul.f32 %v1260, %v1240
        %v1289 = vmul.f32 %v1260, %v1241
        %v1290 = vmul.f32 %v1264, %v1242
        %v1291 = vmul.f32 %v1264, %v1243
        %v1292 = vmul.f32 %v1264, %v1244
        %v1293 = vmul.f32 %v1264, %v1245
        %v1294 = vmul.f32 %v1264, %v1246
        %v1295 = vmul.f32 %v1264, %v1247
        %v1296 = vmul.f32 %v1264, %v1248
        %v1297 = vmul.f32 %v1264, %v1249
        %v1298 = vadd.f32 %v1266, %v1274
        %v1299 = vadd.f32 %v1298, %v1282
        %v1300 = vadd.f32 %v1299, %v1290
        %v1301 = vrot.slane %v1300, 4
        %v1302 = vadd.f32 %v1300, %v1301
        %v1303 = vrot.slane %v1302, 2
        %v1304 = vadd.f32 %v1302, %v1303
        %v1305 = vrot.slane %v1304, 1
        %v1306 = vadd.f32 %v1304, %v1305
        %v1307 = vadd.f32 %v1267, %v1275
        %v1308 = vadd.f32 %v1307, %v1283
        %v1309 = vadd.f32 %v1308, %v1291
        %v1310 = vrot.slane %v1309, 4
        %v1311 = vadd.f32 %v1309, %v1310
        %v1312 = vrot.slane %v1311, 2
        %v1313 = vadd.f32 %v1311, %v1312
        %v1314 = vrot.slane %v1313, 1
        %v1315 = vadd.f32 %v1313, %v1314
        %v1316 = vadd.f32 %v1268, %v1276
        %v1317 = vadd.f32 %v1316, %v1284
        %v1318 = vadd.f32 %v1317, %v1292
        %v1319 = vrot.slane %v1318, 4
        %v1320 = vadd.f32 %v1318, %v1319
        %v1321 = vrot.slane %v1320, 2
        %v1322 = vadd.f32 %v1320, %v1321
        %v1323 = vrot.slane %v1322, 1
        %v1324 = vadd.f32 %v1322, %v1323
        %v1325 = vadd.f32 %v1269, %v1277
        %v1326 = vadd.f32 %v1325, %v1285
        %v1327 = vadd.f32 %v1326, %v1293
        %v1328 = vrot.slane %v1327, 4
        %v1329 = vadd.f32 %v1327, %v1328
        %v1330 = vrot.slane %v1329, 2
        %v1331 = vadd.f32 %v1329, %v1330
        %v1332 = vrot.slane %v1331, 1
        %v1333 = vadd.f32 %v1331, %v1332
        %v1334 = vadd.f32 %v1270, %v1278
        %v1335 = vadd.f32 %v1334, %v1286
        %v1336 = vadd.f32 %v1335, %v1294
        %v1337 = vrot.slane %v1336, 4
        %v1338 = vadd.f32 %v1336, %v1337
        %v1339 = vrot.slane %v1338, 2
        %v1340 = vadd.f32 %v1338, %v1339
        %v1341 = vrot.slane %v1340, 1
        %v1342 = vadd.f32 %v1340, %v1341
        %v1343 = vadd.f32 %v1271, %v1279
        %v1344 = vadd.f32 %v1343, %v1287
        %v1345 = vadd.f32 %v1344, %v1295
        %v1346 = vrot.slane %v1345, 4
        %v1347 = vadd.f32 %v1345, %v1346
        %v1348 = vrot.slane %v1347, 2
        %v1349 = vadd.f32 %v1347, %v1348
        %v1350 = vrot.slane %v1349, 1
        %v1351 = vadd.f32 %v1349, %v1350
        %v1352 = vadd.f32 %v1272, %v1280
        %v1353 = vadd.f32 %v1352, %v1288
        %v1354 = vadd.f32 %v1353, %v1296
        %v1355 = vrot.slane %v1354, 4
        %v1356 = vadd.f32 %v1354, %v1355
        %v1357 = vrot.slane %v1356, 2
        %v1358 = vadd.f32 %v1356, %v1357
        %v1359 = vrot.slane %v1358, 1
        %v1360 = vadd.f32 %v1358, %v1359
        %v1361 = vadd.f32 %v1273, %v1281
        %v1362 = vadd.f32 %v1361, %v1289
        %v1363 = vadd.f32 %v1362, %v1297
        %v1364 = vrot.slane %v1363, 4
        %v1365 = vadd.f32 %v1363, %v1364
        %v1366 = vrot.slane %v1365, 2
        %v1367 = vadd.f32 %v1365, %v1366
        %v1368 = vrot.slane %v1367, 1
        %v1369 = vadd.f32 %v1367, %v1368
        %1370 = vset.pattern.permute.xlu0 5
        %1371 = vperm.xlu0 %1370, %v232
        %v1372 = vpop.permute.xlu0 %1371
        %v1374 = vadd.f32 %v1306, %v1372
        %v1375 = vadd.f32 %v1315, %v1372
        %v1376 = vadd.f32 %v1324, %v1372
        %v1377 = vadd.f32 %v1333, %v1372
        %v1378 = vadd.f32 %v1342, %v1372
        %v1379 = vadd.f32 %v1351, %v1372
        %v1380 = vadd.f32 %v1360, %v1372
        %v1381 = vadd.f32 %v1369, %v1372
        %v1390 = vcombine.low %v1374, %v1375
        %v1391 = vcombine.low %v1376, %v1377
        %v1392 = vcombine.low %v1378, %v1379
        %v1393 = vcombine.low %v1380, %v1381
        %v1395 = vunpack.c.l.s4 1966171168
        %v1396 = vunpack.c.0.s8 %v1395
        %v1397 = vlaneseq
        %v1398 = vshrl.u32 %v1397, 7
        %v1399 = vsub.s32 %v1396, %v1398
        %v1400 = vrot.slane %v1390, %v1399
        %v1402 = vunpack.c.l.s4 1966171168
        %v1403 = vunpack.c.0.s8 %v1402
        %v1404 = vlaneseq
        %v1405 = vshrl.u32 %v1404, 7
        %v1406 = vsub.s32 %v1403, %v1405
        %v1407 = vrot.slane %v1391, %v1406
        %v1409 = vunpack.c.l.s4 1966171168
        %v1410 = vunpack.c.0.s8 %v1409
        %v1411 = vlaneseq
        %v1412 = vshrl.u32 %v1411, 7
        %v1413 = vsub.s32 %v1410, %v1412
        %v1414 = vrot.slane %v1392, %v1413
        %v1416 = vunpack.c.l.s4 1966171168
        %v1417 = vunpack.c.0.s8 %v1416
        %v1418 = vlaneseq
        %v1419 = vshrl.u32 %v1418, 7
        %v1420 = vsub.s32 %v1417, %v1419
        %v1421 = vrot.slane %v1393, %v1420
        %v1422 = vcombine.low %v1400, %v1407
        %v1423 = vcombine.low %v1414, %v1421
        %v1425 = vunpack.c.l.s4 1966171168
        %v1426 = vunpack.c.0.s8 %v1425
        %v1427 = vlaneseq
        %v1428 = vshrl.u32 %v1427, 7
        %v1429 = vsub.s32 %v1426, %v1428
        %v1430 = vrot.slane %v1422, %v1429
        %v1432 = vunpack.c.l.s4 1966171168
        %v1433 = vunpack.c.0.s8 %v1432
        %v1434 = vlaneseq
        %v1435 = vshrl.u32 %v1434, 7
        %v1436 = vsub.s32 %v1433, %v1435
        %v1437 = vrot.slane %v1423, %v1436
        %v1438 = vcombine.low %v1430, %v1437
        %1440 = vst [vmem:[%s228] sm:$0xff] %v1438
        %s1441 = sand.u32 %s119, 1
        %s1442 = scalar_lea.sflag [#allocation4], %s1441
        %s1443 = sand.u32 %s119, 1
        %s1444 = smul.addr %s1443, 8
        %s1445 = scalar_lea.vmem [#allocation7], %s1444
        // Predicated region
        $region45: #{tpu_custom_call.1} parent=35 // pred_check
          %p1446 = pneg %p129
        $region46: #{tpu_custom_call.1} parent=35 // pred_check_branch
          %1448 = sbr.rel (%p1446) target = $region48
        $region47: #{tpu_custom_call.1} parent=35 // pred_region
          %s1449 = smul.u32 8, %s22
          %s1451 = ssub.s32 128, 128
          %1452 = vsyncadd %s1442, %s1451
          %s1453 = smul.addr %s1449, 16
          %s1454 = scalar_lea.hbm %s4, %s1453
          %s1456 = sshll.u32 %s1445, 4
          %s1457 = int_to_ptr.vmem [resolvable:$true] %s1456
          %1459 = dma.vmem_to_hbm [thread:$0]  %s1457, 128, %s1454, %s1442
        $region48: #{tpu_custom_call.1} parent=35 // pred_fallthru
          _
      $region36: #{tpu_custom_call.1} parent=5 // pred_fallthru
        _
      %p1460 = scmp.le.s32.totalorder 2, %s17
      // Predicated region
      $region49: #{tpu_custom_call.1} parent=5 // pred_check
        %p1461 = pneg %p1460
      $region50: #{tpu_custom_call.1} parent=5 // pred_check_branch
        %1463 = sbr.rel (%p1461) target = $region52
      $region51: #{tpu_custom_call.1} parent=5 // pred_region
        %s1464 = ssub.s32 %s17, 2
        // Predicated region
        $region53: #{tpu_custom_call.1} parent=51 // pred_check
          %p1465 = pneg %p135
        $region54: #{tpu_custom_call.1} parent=51 // pred_check_branch
          %1467 = sbr.rel (%p1465) target = $region56
        $region55: #{tpu_custom_call.1} parent=51 // pred_region
          %s1468 = sand.u32 %s120, 1
          %s1469 = scalar_lea.sflag [#allocation4], %s1468
          %s1470 = sand.u32 %s120, 1
          %s1471 = smul.addr %s1470, 8
          %s1472 = scalar_lea.vmem [#allocation7], %s1471
          %1473 = dma.done %s1469, 128
        $region56: #{tpu_custom_call.1} parent=51 // pred_fallthru
          _
      $region52: #{tpu_custom_call.1} parent=5 // pred_fallthru
        _
    $region6: #{tpu_custom_call.1} parent=1 // loop_footer
      %s21 = sadd.s32 1, %s17
    $region7: #{tpu_custom_call.1} parent=1 // loop_footer_branch
      %16 = sbr.rel target = $region3
    $region8: #{tpu_custom_call.1} parent=1 // loop_exit
      _
    %1474 = vsyncpa [#allocation3], 1
    %s1475 = scalar_lea.sflag [#allocation3], 1
    %1476 = vsyncpa %s1475, 1
    %1477 = vsyncpa [#allocation6], 1
    %1478 = vsyncpa [#allocation4], 1
    %s1479 = scalar_lea.sflag [#allocation4], 1
    %1480 = vsyncpa %s1479, 1

</llo_original>
